<compile_context>
chip_gen: v7x
topology: tpu7x:2x2x1
jax: 0.10.0
libtpu: 0.0.40
codegen_flags: <defaults>
</compile_context>

<pallas_src>
import functools

import jax
import jax.numpy as jnp
from jax.experimental import pallas as pl
from jax.experimental.pallas import tpu as pltpu


# ---------------------------------------------------------------------------
# Kernel
# ---------------------------------------------------------------------------
def _make_kernel(num_encoder_layers):
    """Fused-view kernel: one matmul per layer on block-diagonal weights."""
    n_fused = 2 + 2 * num_encoder_layers + 2  # (W_in,b_in) + encoder + (W_dec,b_dec)

    def kernel(*refs):
        x_ref = refs[0]
        p = refs[1:1 + n_fused]
        dec_ref, enc_ref, inp_ref = refs[1 + n_fused:]

        x = x_ref[...]

        # Input projections of both views via one block-diagonal matmul.
        inp = jnp.dot(x, p[0][...], preferred_element_type=jnp.float32) + p[1][...]
        inp_ref[...] = inp.astype(inp_ref.dtype)

        # Encoder: Linear, (ReLU, Linear)* -- no ReLU after the final Linear.
        h = inp
        for li in range(num_encoder_layers):
            if li > 0:
                h = jnp.maximum(h, 0.0)
            w = p[2 + 2 * li][...]
            b = p[3 + 2 * li][...]
            h = jnp.dot(h, w, preferred_element_type=jnp.float32) + b
        enc_ref[...] = h.astype(enc_ref.dtype)

        # Decoder (both views, block diagonal).
        dec = jnp.dot(h, p[-2][...], preferred_element_type=jnp.float32) + p[-1][...]
        dec_ref[...] = dec.astype(dec_ref.dtype)

    return kernel, n_fused


# ---------------------------------------------------------------------------
# Block-diagonal parameter fusion (tiny, done once per call by XLA)
# ---------------------------------------------------------------------------
def _block_diag(a, b):
    z_tr = jnp.zeros((a.shape[0], b.shape[1]), a.dtype)
    z_bl = jnp.zeros((b.shape[0], a.shape[1]), a.dtype)
    return jnp.concatenate(
        [jnp.concatenate([a, z_tr], axis=1),
         jnp.concatenate([z_bl, b], axis=1)],
        axis=0,
    )


def _fuse_params(params_one, params_two):
    """[W,b,...] per view -> [W_bd, b_cat, ...] fused across views."""
    assert len(params_one) == len(params_two)
    fused = []
    for i in range(0, len(params_one), 2):
        fused.append(_block_diag(params_one[i], params_two[i]))
        fused.append(jnp.concatenate([params_one[i + 1], params_two[i + 1]], axis=1))
    return fused


def _choose_batch_tile(batch, cap=1024):
    """Largest tile (multiple of 8, <= cap) not exceeding round_up(batch, 8)."""
    b8 = ((batch + 7) // 8) * 8
    return min(cap, b8)


# ---------------------------------------------------------------------------
# Forward
# ---------------------------------------------------------------------------
@functools.partial(
    jax.jit,
    static_argnames=("in_dims", "d_dims", "hidden_dims", "batch_tile_cap", "out_dtype"),
)
def mae_forward(x, params_one, params_two, in_dims, d_dims, hidden_dims,
                batch_tile_cap=1024, out_dtype=jnp.float32):
    """Pallas equivalent of MAE.forward -> (decoded, encoded, inputs)."""
    B = x.shape[0]
    D_in = in_dims[0] + in_dims[1]
    D_out = d_dims[0] + d_dims[1]        # decoded / inputs width
    D_enc = 2 * hidden_dims[-1]          # encoded width
    L = len(hidden_dims)

    kernel, n_fused = _make_kernel(L)
    fused = _fuse_params(list(params_one), list(params_two))
    assert len(fused) == n_fused

    TB = _choose_batch_tile(B, batch_tile_cap)
    grid = (pl.cdiv(B, TB),)

    # Activations / outputs tiled over batch; weights/biases resident
    # (constant block index -> never re-copied between grid steps).
    x_spec = pl.BlockSpec((TB, D_in), lambda i: (i, 0))
    param_specs = [pl.BlockSpec(p.shape, lambda i: (0, 0)) for p in fused]
    out_specs = (
        pl.BlockSpec((TB, D_out), lambda i: (i, 0)),   # decoded
        pl.BlockSpec((TB, D_enc), lambda i: (i, 0)),   # encoded
        pl.BlockSpec((TB, D_out), lambda i: (i, 0)),   # inputs (post in1/in2)
    )
    out_shapes = (
        jax.ShapeDtypeStruct((B, D_out), out_dtype),
        jax.ShapeDtypeStruct((B, D_enc), out_dtype),
        jax.ShapeDtypeStruct((B, D_out), out_dtype),
    )

    # Advisory cost estimate (kernel is HBM-bandwidth bound, ~25 FLOP/byte).
    layer_dims = [(D_in, D_out)]
    prev = D_out
    for h in hidden_dims:
        layer_dims.append((prev, 2 * h))
        prev = 2 * h
    layer_dims.append((prev, D_out))
    flops = 2 * B * sum(k * n for k, n in layer_dims)
    out_itemsize = jnp.dtype(out_dtype).itemsize
    bytes_accessed = (
        B * D_in * x.dtype.itemsize
        + B * (2 * D_out + D_enc) * out_itemsize
        + sum(int(p.size) * p.dtype.itemsize for p in fused)
    )

    decoded, encoded, inputs = pl.pallas_call(
        kernel,
        out_shape=out_shapes,
        grid=grid,
        in_specs=[x_spec] + param_specs,
        out_specs=out_specs,
        compiler_params=pltpu.CompilerParams(
            dimension_semantics=("parallel",),
        ),
        cost_estimate=pl.CostEstimate(
            flops=flops, transcendentals=0, bytes_accessed=bytes_accessed
        ),
    )(x, *fused)

    return decoded, encoded, inputs


# ---------------------------------------------------------------------------
# Parameter init (matches nn.Linear default init; stored as [fan_in, fan_out])
# ---------------------------------------------------------------------------
def _init_linear(key, fan_in, fan_out):
    kw, kb = jax.random.split(key)
    bound = 1.0 / jnp.sqrt(float(fan_in))
    w = jax.random.uniform(kw, (fan_in, fan_out), jnp.float32, -bound, bound)
    b = jax.random.uniform(kb, (1, fan_out), jnp.float32, -bound, bound)
    return w, b


def init_view_params(key, in_dim, d_dim, hidden_dims):
    """Flat per-view param list: [W_in, b_in, W_enc0, b_enc0, ..., W_dec, b_dec]."""
    n_layers = 1 + len(hidden_dims) + 1
    keys = jax.random.split(key, n_layers)
    params = []
    params += list(_init_linear(keys[0], in_dim, d_dim))          # in1 / in2
    prev = d_dim
    for i, h in enumerate(hidden_dims):                            # encoder
        params += list(_init_linear(keys[1 + i], prev, h))
        prev = h
    params += list(_init_linear(keys[-1], hidden_dims[-1], d_dim))  # decoder
    return params


def _ref_view(x, params, hidden_dims):
    """Pure-JAX reference for one view (correctness check)."""
    w_in, b_in = params[0], params[1]
    w_d, b_d = params[-2], params[-1]
    enc_p = params[2:-2]
    inp = x @ w_in + b_in
    h = inp
    for li in range(len(hidden_dims)):
        if li > 0:
            h = jnp.maximum(h, 0.0)
        h = h @ enc_p[2 * li] + enc_p[2 * li + 1]
    enc = h
    dec = enc @ w_d + b_d
    return inp, enc, dec


if __name__ == "__main__":
    # Small deterministic configuration consistent with the module's __init__.
    batch = 8
    in_dims = (16, 24)
    d_dims = (32, 40)
    hidden_dims = (64, 32)

    root = jax.random.PRNGKey(0)
    k_x, k_p1, k_p2 = jax.random.split(root, 3)

    x = jax.random.normal(k_x, (batch, sum(in_dims)), jnp.float32)
    params_one = init_view_params(k_p1, in_dims[0], d_dims[0], hidden_dims)
    params_two = init_view_params(k_p2, in_dims[1], d_dims[1], hidden_dims)

    decoded, encoded, inputs = jax.block_until_ready(
        mae_forward(x, tuple(params_one), tuple(params_two),
                    in_dims, d_dims, hidden_dims)
    )

    # Sanity check against a pure-JAX reference.
    x1 = x[:, : in_dims[0]]
    x2 = x[:, in_dims[0]:]
    i1, e1, d1 = _ref_view(x1, params_one, hidden_dims)
    i2, e2, d2 = _ref_view(x2, params_two, hidden_dims)
    ref_dec = jnp.concatenate([d1, d2], axis=-1)
    ref_enc = jnp.concatenate([e1, e2], axis=-1)
    ref_inp = jnp.concatenate([i1, i2], axis=-1)

    assert decoded.shape == (batch, d_dims[0] + d_dims[1])
    assert encoded.shape == (batch, 2 * hidden_dims[-1])
    assert inputs.shape == (batch, d_dims[0] + d_dims[1])
    assert jnp.allclose(decoded, ref_dec, atol=1e-5, rtol=1e-5)
    assert jnp.allclose(encoded, ref_enc, atol=1e-5, rtol=1e-5)
    assert jnp.allclose(inputs, ref_inp, atol=1e-5, rtol=1e-5)

    print("KERNEL_OK")
</pallas_src>

<mosaic_0001>
module attributes {stable_mosaic.version = 11 : i64} {
  func.func @kernel(%arg0: i32, %arg1: memref<8x40xf32, #tpu.memory_space<vmem>>, %arg2: memref<40x72xf32, #tpu.memory_space<vmem>>, %arg3: memref<1x72xf32, #tpu.memory_space<vmem>>, %arg4: memref<72x128xf32, #tpu.memory_space<vmem>>, %arg5: memref<1x128xf32, #tpu.memory_space<vmem>>, %arg6: memref<128x64xf32, #tpu.memory_space<vmem>>, %arg7: memref<1x64xf32, #tpu.memory_space<vmem>>, %arg8: memref<64x72xf32, #tpu.memory_space<vmem>>, %arg9: memref<1x72xf32, #tpu.memory_space<vmem>>, %arg10: memref<8x72xf32, #tpu.memory_space<vmem>>, %arg11: memref<8x64xf32, #tpu.memory_space<vmem>>, %arg12: memref<8x72xf32, #tpu.memory_space<vmem>>) attributes {dimension_semantics = [#tpu.dimension_semantics<parallel>], iteration_bounds = array<i64: 1>, scalar_prefetch = 0 : i64, scratch_operands = 0 : i64, tpu.core_type = #tpu.core_type<tc>, window_params = [{transform_indices = @transform_0, window_bounds = array<i64: 8, 40>}, {pipeline_mode = #tpu.pipeline_mode<synchronous>, transform_indices = @transform_1, window_bounds = array<i64: 40, 72>}, {pipeline_mode = #tpu.pipeline_mode<synchronous>, transform_indices = @transform_2, window_bounds = array<i64: 1, 72>}, {pipeline_mode = #tpu.pipeline_mode<synchronous>, transform_indices = @transform_3, window_bounds = array<i64: 72, 128>}, {pipeline_mode = #tpu.pipeline_mode<synchronous>, transform_indices = @transform_4, window_bounds = array<i64: 1, 128>}, {pipeline_mode = #tpu.pipeline_mode<synchronous>, transform_indices = @transform_5, window_bounds = array<i64: 128, 64>}, {pipeline_mode = #tpu.pipeline_mode<synchronous>, transform_indices = @transform_6, window_bounds = array<i64: 1, 64>}, {pipeline_mode = #tpu.pipeline_mode<synchronous>, transform_indices = @transform_7, window_bounds = array<i64: 64, 72>}, {pipeline_mode = #tpu.pipeline_mode<synchronous>, transform_indices = @transform_8, window_bounds = array<i64: 1, 72>}, {transform_indices = @transform_9, window_bounds = array<i64: 8, 72>}, {transform_indices = @transform_10, window_bounds = array<i64: 8, 64>}, {transform_indices = @transform_11, window_bounds = array<i64: 8, 72>}]} {
    %c0 = arith.constant 0 : index
    %c0_0 = arith.constant 0 : index
    %0 = vector.load %arg1[%c0, %c0_0] : memref<8x40xf32, #tpu.memory_space<vmem>>, vector<8x40xf32>
    %c0_1 = arith.constant 0 : index
    %c0_2 = arith.constant 0 : index
    %1 = vector.load %arg2[%c0_1, %c0_2] : memref<40x72xf32, #tpu.memory_space<vmem>>, vector<40x72xf32>
    %cst = arith.constant dense<0.000000e+00> : vector<8x72xf32>
    %2 = tpu.matmul %0, %1, %cst {dimension_numbers = #tpu.dot_dimension_numbers<[1], [0], [0], [1], [0, 0, 1, 1], [], []>} : vector<8x40xf32>, vector<40x72xf32>, vector<8x72xf32> -> vector<8x72xf32>
    %c0_3 = arith.constant 0 : index
    %c0_4 = arith.constant 0 : index
    %3 = vector.load %arg3[%c0_3, %c0_4] : memref<1x72xf32, #tpu.memory_space<vmem>>, vector<1x72xf32>
    %4 = vector.broadcast %3 : vector<1x72xf32> to vector<8x72xf32>
    %5 = arith.addf %2, %4 : vector<8x72xf32>
    %c0_5 = arith.constant 0 : index
    %c0_6 = arith.constant 0 : index
    %6 = vector.load %arg12[%c0_5, %c0_6] : memref<8x72xf32, #tpu.memory_space<vmem>>, vector<8x72xf32>
    tpu.vector_store %arg12[%c0_5, %c0_6], %5 {strides = array<i32>} : memref<8x72xf32, #tpu.memory_space<vmem>>, vector<8x72xf32>,
    %c0_7 = arith.constant 0 : index
    %c0_8 = arith.constant 0 : index
    %7 = vector.load %arg4[%c0_7, %c0_8] : memref<72x128xf32, #tpu.memory_space<vmem>>, vector<72x128xf32>
    %c0_9 = arith.constant 0 : index
    %c0_10 = arith.constant 0 : index
    %8 = vector.load %arg5[%c0_9, %c0_10] : memref<1x128xf32, #tpu.memory_space<vmem>>, vector<1x128xf32>
    %cst_11 = arith.constant dense<0.000000e+00> : vector<8x128xf32>
    %9 = tpu.matmul %5, %7, %cst_11 {dimension_numbers = #tpu.dot_dimension_numbers<[1], [0], [0], [1], [0, 0, 1, 1], [], []>} : vector<8x72xf32>, vector<72x128xf32>, vector<8x128xf32> -> vector<8x128xf32>
    %10 = vector.broadcast %8 : vector<1x128xf32> to vector<8x128xf32>
    %11 = arith.addf %9, %10 : vector<8x128xf32>
    %cst_12 = arith.constant 0.000000e+00 : f32
    %12 = vector.broadcast %cst_12 : f32 to vector<8x128xf32>
    %13 = arith.maximumf %11, %12 : vector<8x128xf32>
    %c0_13 = arith.constant 0 : index
    %c0_14 = arith.constant 0 : index
    %14 = vector.load %arg6[%c0_13, %c0_14] : memref<128x64xf32, #tpu.memory_space<vmem>>, vector<128x64xf32>
    %c0_15 = arith.constant 0 : index
    %c0_16 = arith.constant 0 : index
    %15 = vector.load %arg7[%c0_15, %c0_16] : memref<1x64xf32, #tpu.memory_space<vmem>>, vector<1x64xf32>
    %cst_17 = arith.constant dense<0.000000e+00> : vector<8x64xf32>
    %16 = tpu.matmul %13, %14, %cst_17 {dimension_numbers = #tpu.dot_dimension_numbers<[1], [0], [0], [1], [0, 0, 1, 1], [], []>} : vector<8x128xf32>, vector<128x64xf32>, vector<8x64xf32> -> vector<8x64xf32>
    %17 = vector.broadcast %15 : vector<1x64xf32> to vector<8x64xf32>
    %18 = arith.addf %16, %17 : vector<8x64xf32>
    %c0_18 = arith.constant 0 : index
    %c0_19 = arith.constant 0 : index
    %19 = vector.load %arg11[%c0_18, %c0_19] : memref<8x64xf32, #tpu.memory_space<vmem>>, vector<8x64xf32>
    tpu.vector_store %arg11[%c0_18, %c0_19], %18 {strides = array<i32>} : memref<8x64xf32, #tpu.memory_space<vmem>>, vector<8x64xf32>,
    %c0_20 = arith.constant 0 : index
    %c0_21 = arith.constant 0 : index
    %20 = vector.load %arg8[%c0_20, %c0_21] : memref<64x72xf32, #tpu.memory_space<vmem>>, vector<64x72xf32>
    %cst_22 = arith.constant dense<0.000000e+00> : vector<8x72xf32>
    %21 = tpu.matmul %18, %20, %cst_22 {dimension_numbers = #tpu.dot_dimension_numbers<[1], [0], [0], [1], [0, 0, 1, 1], [], []>} : vector<8x64xf32>, vector<64x72xf32>, vector<8x72xf32> -> vector<8x72xf32>
    %c0_23 = arith.constant 0 : index
    %c0_24 = arith.constant 0 : index
    %22 = vector.load %arg9[%c0_23, %c0_24] : memref<1x72xf32, #tpu.memory_space<vmem>>, vector<1x72xf32>
    %23 = vector.broadcast %22 : vector<1x72xf32> to vector<8x72xf32>
    %24 = arith.addf %21, %23 : vector<8x72xf32>
    %c0_25 = arith.constant 0 : index
    %c0_26 = arith.constant 0 : index
    %25 = vector.load %arg10[%c0_25, %c0_26] : memref<8x72xf32, #tpu.memory_space<vmem>>, vector<8x72xf32>
    tpu.vector_store %arg10[%c0_25, %c0_26], %24 {strides = array<i32>} : memref<8x72xf32, #tpu.memory_space<vmem>>, vector<8x72xf32>,
    return
  }
  func.func @transform_0(%arg0: i32) -> (i32, i32) {
    %c0_i32 = arith.constant 0 : i32
    %c0_i32_0 = arith.constant 0 : i32
    return %arg0, %c0_i32 : i32, i32
  }
  func.func @transform_1(%arg0: i32) -> (i32, i32) {
    %c0_i32 = arith.constant 0 : i32
    %c0_i32_0 = arith.constant 0 : i32
    %c0_i32_1 = arith.constant 0 : i32
    return %c0_i32, %c0_i32_0 : i32, i32
  }
  func.func @transform_2(%arg0: i32) -> (i32, i32) {
    %c0_i32 = arith.constant 0 : i32
    %c0_i32_0 = arith.constant 0 : i32
    %c0_i32_1 = arith.constant 0 : i32
    return %c0_i32, %c0_i32_0 : i32, i32
  }
  func.func @transform_3(%arg0: i32) -> (i32, i32) {
    %c0_i32 = arith.constant 0 : i32
    %c0_i32_0 = arith.constant 0 : i32
    %c0_i32_1 = arith.constant 0 : i32
    return %c0_i32, %c0_i32_0 : i32, i32
  }
  func.func @transform_4(%arg0: i32) -> (i32, i32) {
    %c0_i32 = arith.constant 0 : i32
    %c0_i32_0 = arith.constant 0 : i32
    %c0_i32_1 = arith.constant 0 : i32
    return %c0_i32, %c0_i32_0 : i32, i32
  }
  func.func @transform_5(%arg0: i32) -> (i32, i32) {
    %c0_i32 = arith.constant 0 : i32
    %c0_i32_0 = arith.constant 0 : i32
    %c0_i32_1 = arith.constant 0 : i32
    return %c0_i32, %c0_i32_0 : i32, i32
  }
  func.func @transform_6(%arg0: i32) -> (i32, i32) {
    %c0_i32 = arith.constant 0 : i32
    %c0_i32_0 = arith.constant 0 : i32
    %c0_i32_1 = arith.constant 0 : i32
    return %c0_i32, %c0_i32_0 : i32, i32
  }
  func.func @transform_7(%arg0: i32) -> (i32, i32) {
    %c0_i32 = arith.constant 0 : i32
    %c0_i32_0 = arith.constant 0 : i32
    %c0_i32_1 = arith.constant 0 : i32
    return %c0_i32, %c0_i32_0 : i32, i32
  }
  func.func @transform_8(%arg0: i32) -> (i32, i32) {
    %c0_i32 = arith.constant 0 : i32
    %c0_i32_0 = arith.constant 0 : i32
    %c0_i32_1 = arith.constant 0 : i32
    return %c0_i32, %c0_i32_0 : i32, i32
  }
  func.func @transform_9(%arg0: i32) -> (i32, i32) {
    %c0_i32 = arith.constant 0 : i32
    %c0_i32_0 = arith.constant 0 : i32
    return %arg0, %c0_i32 : i32, i32
  }
  func.func @transform_10(%arg0: i32) -> (i32, i32) {
    %c0_i32 = arith.constant 0 : i32
    %c0_i32_0 = arith.constant 0 : i32
    return %arg0, %c0_i32 : i32, i32
  }
  func.func @transform_11(%arg0: i32) -> (i32, i32) {
    %c0_i32 = arith.constant 0 : i32
    %c0_i32_0 = arith.constant 0 : i32
    return %arg0, %c0_i32 : i32, i32
  }
}

</mosaic_0001>

<llo_original>
// kernel: mae_forward.1
$region0: #{mae_forward.1}
  #allocation0 [shape = 'u32[]', space=smem, size = 0x4, offset = 0x4, fixed_abs, tag = 'smem constant byte address 0x4 - core index']
  #allocation1 [shape = 'u32[144,128]{1,0:T(1,128)}', space=vmem, size = 0x12000, scoped, tag = 'internal scratch']
  %s0 = inlined_call_operand.vmem [shape: f32[8,40], index: 0, kind: input, shape index: {}]
  %s1 = inlined_call_operand.vmem [shape: f32[40,72], index: 1, kind: input, shape index: {}]
  %s2 = inlined_call_operand.vmem [shape: f32[1,72], index: 2, kind: input, shape index: {}]
  %s3 = inlined_call_operand.vmem [shape: f32[72,128], index: 3, kind: input, shape index: {}]
  %s4 = inlined_call_operand.vmem [shape: f32[1,128], index: 4, kind: input, shape index: {}]
  %s5 = inlined_call_operand.vmem [shape: f32[128,64], index: 5, kind: input, shape index: {}]
  %s6 = inlined_call_operand.vmem [shape: f32[1,64], index: 6, kind: input, shape index: {}]
  %s7 = inlined_call_operand.vmem [shape: f32[64,72], index: 7, kind: input, shape index: {}]
  %s8 = inlined_call_operand.vmem [shape: f32[1,72], index: 8, kind: input, shape index: {}]
  %s9 = inlined_call_operand.hbm [shape: f32[8,72], index: 9, kind: output, shape index: {0}]
  %s10 = inlined_call_operand.hbm [shape: f32[8,64], index: 10, kind: output, shape index: {1}]
  %s11 = inlined_call_operand.hbm [shape: f32[8,72], index: 11, kind: output, shape index: {2}]
  %12 = xla_tuple %s9, %s10, %s11
  %s13 = sld [smem:[#allocation0]]
  $region62: #{mae_forward.1} parent=0
    _
  %s15 = ssub.s32 1, %s13
  %s16 = scalar_select 0, %s15, %s13
  $region1: #{mae_forward.1} parent=0
    #allocation2 [shape = 'u8[4096]{0}', space=vmem, size = 0x1000, scoped, tag = 'output window, operand 0, single buffered']
    #allocation3 [shape = 's32[1]{0}', space=sflag, size = 0x4, scoped, tag = 'scoped memory for mae_forward.1']
    #allocation4 [shape = 'u8[4096]{0}', space=vmem, size = 0x1000, scoped, tag = 'output window, operand 1, single buffered']
    #allocation5 [shape = 's32[1]{0}', space=sflag, size = 0x4, scoped, tag = 'scoped memory for mae_forward.1']
    #allocation6 [shape = 'u8[4096]{0}', space=vmem, size = 0x1000, scoped, tag = 'output window, operand 2, single buffered']
    %17 = vsyncpa [#allocation3], 0
    %18 = vsyncpa [#allocation5], 0
    // Predicated region
    $region2: #{mae_forward.1} parent=1 // pred_check
      _
    $region3: #{mae_forward.1} parent=1 // pred_check_branch
      %20 = sbr.rel (0) target = $region5
    $region4: #{mae_forward.1} parent=1 // pred_region
      _
    $region5: #{mae_forward.1} parent=1 // pred_fallthru
      _
    // Predicated region
    $region6: #{mae_forward.1} parent=1 // pred_check
      _
    $region7: #{mae_forward.1} parent=1 // pred_check_branch
      %22 = sbr.rel (0) target = $region9
    $region8: #{mae_forward.1} parent=1 // pred_region
      _
    $region9: #{mae_forward.1} parent=1 // pred_fallthru
      _
    // Predicated region
    $region10: #{mae_forward.1} parent=1 // pred_check
      _
    $region11: #{mae_forward.1} parent=1 // pred_check_branch
      %24 = sbr.rel (0) target = $region13
    $region12: #{mae_forward.1} parent=1 // pred_region
      _
    $region13: #{mae_forward.1} parent=1 // pred_fallthru
      _
    // Predicated region
    $region14: #{mae_forward.1} parent=1 // pred_check
      _
    $region15: #{mae_forward.1} parent=1 // pred_check_branch
      %26 = sbr.rel (0) target = $region17
    $region16: #{mae_forward.1} parent=1 // pred_region
      _
    $region17: #{mae_forward.1} parent=1 // pred_fallthru
      _
    // Predicated region
    $region18: #{mae_forward.1} parent=1 // pred_check
      _
    $region19: #{mae_forward.1} parent=1 // pred_check_branch
      %28 = sbr.rel (0) target = $region21
    $region20: #{mae_forward.1} parent=1 // pred_region
      _
    $region21: #{mae_forward.1} parent=1 // pred_fallthru
      _
    // Predicated region
    $region22: #{mae_forward.1} parent=1 // pred_check
      _
    $region23: #{mae_forward.1} parent=1 // pred_check_branch
      %30 = sbr.rel (0) target = $region25
    $region24: #{mae_forward.1} parent=1 // pred_region
      _
    $region25: #{mae_forward.1} parent=1 // pred_fallthru
      _
    // Predicated region
    $region26: #{mae_forward.1} parent=1 // pred_check
      _
    $region27: #{mae_forward.1} parent=1 // pred_check_branch
      %32 = sbr.rel (0) target = $region29
    $region28: #{mae_forward.1} parent=1 // pred_region
      _
    $region29: #{mae_forward.1} parent=1 // pred_fallthru
      _
    // Predicated region
    $region30: #{mae_forward.1} parent=1 // pred_check
      _
    $region31: #{mae_forward.1} parent=1 // pred_check_branch
      %34 = sbr.rel (0) target = $region33
    $region32: #{mae_forward.1} parent=1 // pred_region
      _
    $region33: #{mae_forward.1} parent=1 // pred_fallthru
      _
    // Predicated region
    $region34: #{mae_forward.1} parent=1 // pred_check
      _
    $region35: #{mae_forward.1} parent=1 // pred_check_branch
      %36 = sbr.rel (0) target = $region37
    $region36: #{mae_forward.1} parent=1 // pred_region
      _
    $region37: #{mae_forward.1} parent=1 // pred_fallthru
      _
    %v37 = vld [vmem:[%s0] sm:$0xff]
    %v38 = vld [vmem:[%s1] sm:$0xff]
    %v39 = vld [vmem:[%s1 + $0x8] sm:$0xff]
    %v40 = vld [vmem:[%s1 + $0x10] sm:$0xff]
    %v41 = vld [vmem:[%s1 + $0x18] sm:$0xff]
    %v42 = vld [vmem:[%s1 + $0x20] sm:$0xff]
    %v43 = vld [vmem:[%s2] sm:$0x1]
    %v45 = vlaneseq
    %v46 = vshrl.u32 %v45, 7
    %v47 = vsub.s32 0, %v46
    %v48 = vrot.slane %v43, %v47
    %vm50 = vcmask 326656
    %v52 = vsel %vm50, %v37, 0
    %54 = vmatprep.subr.mxu0 0.0
    %55 = vmatpush1.msra.mxu0 %v38
    %56 = vmatprep.subr.mxu0 0.0
    %57 = vmatpush1.msra.mxu0 %v39
    %58 = vmatprep.subr.mxu0 0.0
    %59 = vmatpush1.msra.mxu0 %v40
    %60 = vmatprep.subr.mxu0 0.0
    %61 = vmatpush1.msra.mxu0 %v41
    %62 = vmatprep.subr.mxu0 0.0
    %63 = vmatpush1.msra.mxu0 %v42
    %64 = vmatprep.subr.mxu0 0.0
    %65 = vmatpush1.msra.mxu0 0.0
    %66 = vmatprep.subr.mxu0 0.0
    %67 = vmatpush1.msra.mxu0 0.0
    %68 = vmatprep.subr.mxu0 0.0
    %69 = vmatpush1.msra.mxu0 0.0
    %70 = vmatprep.subr.mxu0 0.0
    %71 = vmatpush1.msra.mxu0 0.0
    %72 = vmatprep.subr.mxu0 0.0
    %73 = vmatpush1.msra.mxu0 0.0
    %74 = vmatprep.subr.mxu0 0.0
    %75 = vmatpush1.msra.mxu0 0.0
    %76 = vmatprep.subr.mxu0 0.0
    %77 = vmatpush1.msra.mxu0 0.0
    %78 = vmatprep.subr.mxu0 0.0
    %79 = vmatpush1.msra.mxu0 0.0
    %80 = vmatprep.subr.mxu0 0.0
    %81 = vmatpush1.msra.mxu0 0.0
    %82 = vmatprep.subr.mxu0 0.0
    %83 = vmatpush1.msra.mxu0 0.0
    %84 = vmatprep.subr.mxu0 0.0
    %85 = vmatpush1.msra.mxu0 0.0
    %86 = vmatprep.subr.mxu0 0.0
    %87 = vmatpush1.msra.mxu0 0.0
    %88 = vmatprep.subr.mxu0 0.0
    %89 = vmatpush1.msra.mxu0 0.0
    %90 = vmatprep.subr.mxu0 0.0
    %91 = vmatpush1.msra.mxu0 0.0
    %92 = vmatprep.subr.mxu0 0.0
    %93 = vmatpush1.msra.mxu0 0.0
    %94 = vmatprep.subr.mxu0 0.0
    %95 = vmatpush1.msra.mxu0 0.0
    %96 = vmatprep.subr.mxu0 0.0
    %97 = vmatpush1.msra.mxu0 0.0
    %98 = vmatprep.subr.mxu0 0.0
    %99 = vmatpush1.msra.mxu0 0.0
    %100 = vmatprep.subr.mxu0 0.0
    %101 = vmatpush1.msra.mxu0 0.0
    %102 = vmatprep.subr.mxu0 0.0
    %103 = vmatpush1.msra.mxu0 0.0
    %104 = vmatprep.subr.mxu0 0.0
    %105 = vmatpush1.msra.mxu0 0.0
    %106 = vmatprep.subr.mxu0 0.0
    %107 = vmatpush1.msra.mxu0 0.0
    %108 = vmatprep.subr.mxu0 0.0
    %109 = vmatpush1.msra.mxu0 0.0
    %110 = vmatprep.subr.mxu0 0.0
    %111 = vmatpush1.msra.mxu0 0.0
    %112 = vmatprep.subr.mxu0 0.0
    %113 = vmatpush1.msra.mxu0 0.0
    %114 = vmatprep.subr.mxu0 0.0
    %115 = vmatpush1.msra.mxu0 0.0
    %116 = vmatprep.subr.mxu0 0.0
    %117 = vmatpush1.msra.mxu0 0.0
    %118 = vmatprep.mubr.f32.mxu0 0.0
    %119 = vmatmul.mubr.f32.gmra.mrb[0].mxu0 %v52
    %v120 = vpop.f32.mrb[0].mxu0
    %v121 = vadd.f32 %v48, %v120
    %v122 = vpop.f32.mrb[0].mxu0
    %123 = vdwg.mxu0
    %vm124 = vcmask 588800
    %125 = vst.msk [vmem:[#allocation6] sm:$0xff] %vm124, %v121
    %v126 = vld [vmem:[%s3] sm:$0xff]
    %v127 = vld [vmem:[%s3 + $0x8] sm:$0xff]
    %v128 = vld [vmem:[%s3 + $0x10] sm:$0xff]
    %v129 = vld [vmem:[%s3 + $0x18] sm:$0xff]
    %v130 = vld [vmem:[%s3 + $0x20] sm:$0xff]
    %v131 = vld [vmem:[%s3 + $0x28] sm:$0xff]
    %v132 = vld [vmem:[%s3 + $0x30] sm:$0xff]
    %v133 = vld [vmem:[%s3 + $0x38] sm:$0xff]
    %v134 = vld [vmem:[%s3 + $0x40] sm:$0xff]
    %v135 = vld [vmem:[%s4] sm:$0x1]
    %v137 = vlaneseq
    %v138 = vshrl.u32 %v137, 7
    %v139 = vsub.s32 0, %v138
    %v140 = vrot.slane %v135, %v139
    %v143 = vsel %vm124, %v121, 0
    %145 = vmatprep.subr.mxu0 0.0
    %146 = vmatpush1.msra.mxu0 %v126
    %147 = vmatprep.subr.mxu0 0.0
    %148 = vmatpush1.msra.mxu0 %v127
    %149 = vmatprep.subr.mxu0 0.0
    %150 = vmatpush1.msra.mxu0 %v128
    %151 = vmatprep.subr.mxu0 0.0
    %152 = vmatpush1.msra.mxu0 %v129
    %153 = vmatprep.subr.mxu0 0.0
    %154 = vmatpush1.msra.mxu0 %v130
    %155 = vmatprep.subr.mxu0 0.0
    %156 = vmatpush1.msra.mxu0 %v131
    %157 = vmatprep.subr.mxu0 0.0
    %158 = vmatpush1.msra.mxu0 %v132
    %159 = vmatprep.subr.mxu0 0.0
    %160 = vmatpush1.msra.mxu0 %v133
    %161 = vmatprep.subr.mxu0 0.0
    %162 = vmatpush1.msra.mxu0 %v134
    %163 = vmatprep.subr.mxu0 0.0
    %164 = vmatpush1.msra.mxu0 0.0
    %165 = vmatprep.subr.mxu0 0.0
    %166 = vmatpush1.msra.mxu0 0.0
    %167 = vmatprep.subr.mxu0 0.0
    %168 = vmatpush1.msra.mxu0 0.0
    %169 = vmatprep.subr.mxu0 0.0
    %170 = vmatpush1.msra.mxu0 0.0
    %171 = vmatprep.subr.mxu0 0.0
    %172 = vmatpush1.msra.mxu0 0.0
    %173 = vmatprep.subr.mxu0 0.0
    %174 = vmatpush1.msra.mxu0 0.0
    %175 = vmatprep.subr.mxu0 0.0
    %176 = vmatpush1.msra.mxu0 0.0
    %177 = vmatprep.subr.mxu0 0.0
    %178 = vmatpush1.msra.mxu0 0.0
    %179 = vmatprep.subr.mxu0 0.0
    %180 = vmatpush1.msra.mxu0 0.0
    %181 = vmatprep.subr.mxu0 0.0
    %182 = vmatpush1.msra.mxu0 0.0
    %183 = vmatprep.subr.mxu0 0.0
    %184 = vmatpush1.msra.mxu0 0.0
    %185 = vmatprep.subr.mxu0 0.0
    %186 = vmatpush1.msra.mxu0 0.0
    %187 = vmatprep.subr.mxu0 0.0
    %188 = vmatpush1.msra.mxu0 0.0
    %189 = vmatprep.subr.mxu0 0.0
    %190 = vmatpush1.msra.mxu0 0.0
    %191 = vmatprep.subr.mxu0 0.0
    %192 = vmatpush1.msra.mxu0 0.0
    %193 = vmatprep.subr.mxu0 0.0
    %194 = vmatpush1.msra.mxu0 0.0
    %195 = vmatprep.subr.mxu0 0.0
    %196 = vmatpush1.msra.mxu0 0.0
    %197 = vmatprep.subr.mxu0 0.0
    %198 = vmatpush1.msra.mxu0 0.0
    %199 = vmatprep.subr.mxu0 0.0
    %200 = vmatpush1.msra.mxu0 0.0
    %201 = vmatprep.subr.mxu0 0.0
    %202 = vmatpush1.msra.mxu0 0.0
    %203 = vmatprep.subr.mxu0 0.0
    %204 = vmatpush1.msra.mxu0 0.0
    %205 = vmatprep.subr.mxu0 0.0
    %206 = vmatpush1.msra.mxu0 0.0
    %207 = vmatprep.subr.mxu0 0.0
    %208 = vmatpush1.msra.mxu0 0.0
    %209 = vmatprep.mubr.f32.mxu0 0.0
    %210 = vmatmul.mubr.f32.gmra.mrb[0].mxu0 %v143
    %v211 = vpop.f32.mrb[0].mxu0
    %v212 = vadd.f32 %v140, %v211
    %v213 = vpop.f32.mrb[0].mxu0
    %214 = vdwg.mxu0
    %v215 = vmax.f32 %v212, 0.0
    %v216 = vld [vmem:[%s5] sm:$0xff]
    %v217 = vld [vmem:[%s5 + $0x8] sm:$0xff]
    %v218 = vld [vmem:[%s5 + $0x10] sm:$0xff]
    %v219 = vld [vmem:[%s5 + $0x18] sm:$0xff]
    %v220 = vld [vmem:[%s5 + $0x20] sm:$0xff]
    %v221 = vld [vmem:[%s5 + $0x28] sm:$0xff]
    %v222 = vld [vmem:[%s5 + $0x30] sm:$0xff]
    %v223 = vld [vmem:[%s5 + $0x38] sm:$0xff]
    %v224 = vld [vmem:[%s5 + $0x40] sm:$0xff]
    %v225 = vld [vmem:[%s5 + $0x48] sm:$0xff]
    %v226 = vld [vmem:[%s5 + $0x50] sm:$0xff]
    %v227 = vld [vmem:[%s5 + $0x58] sm:$0xff]
    %v228 = vld [vmem:[%s5 + $0x60] sm:$0xff]
    %v229 = vld [vmem:[%s5 + $0x68] sm:$0xff]
    %v230 = vld [vmem:[%s5 + $0x70] sm:$0xff]
    %v231 = vld [vmem:[%s5 + $0x78] sm:$0xff]
    %v232 = vld [vmem:[%s6] sm:$0x1]
    %v234 = vlaneseq
    %v235 = vshrl.u32 %v234, 7
    %v236 = vsub.s32 0, %v235
    %v237 = vrot.slane %v232, %v236
    %239 = vmatprep.subr.mxu0 0.0
    %240 = vmatpush1.msra.mxu0 %v216
    %241 = vmatprep.subr.mxu0 0.0
    %242 = vmatpush1.msra.mxu0 %v217
    %243 = vmatprep.subr.mxu0 0.0
    %244 = vmatpush1.msra.mxu0 %v218
    %245 = vmatprep.subr.mxu0 0.0
    %246 = vmatpush1.msra.mxu0 %v219
    %247 = vmatprep.subr.mxu0 0.0
    %248 = vmatpush1.msra.mxu0 %v220
    %249 = vmatprep.subr.mxu0 0.0
    %250 = vmatpush1.msra.mxu0 %v221
    %251 = vmatprep.subr.mxu0 0.0
    %252 = vmatpush1.msra.mxu0 %v222
    %253 = vmatprep.subr.mxu0 0.0
    %254 = vmatpush1.msra.mxu0 %v223
    %255 = vmatprep.subr.mxu0 0.0
    %256 = vmatpush1.msra.mxu0 %v224
    %257 = vmatprep.subr.mxu0 0.0
    %258 = vmatpush1.msra.mxu0 %v225
    %259 = vmatprep.subr.mxu0 0.0
    %260 = vmatpush1.msra.mxu0 %v226
    %261 = vmatprep.subr.mxu0 0.0
    %262 = vmatpush1.msra.mxu0 %v227
    %263 = vmatprep.subr.mxu0 0.0
    %264 = vmatpush1.msra.mxu0 %v228
    %265 = vmatprep.subr.mxu0 0.0
    %266 = vmatpush1.msra.mxu0 %v229
    %267 = vmatprep.subr.mxu0 0.0
    %268 = vmatpush1.msra.mxu0 %v230
    %269 = vmatprep.subr.mxu0 0.0
    %270 = vmatpush1.msra.mxu0 %v231
    %271 = vmatprep.subr.mxu0 0.0
    %272 = vmatpush1.msra.mxu0 0.0
    %273 = vmatprep.subr.mxu0 0.0
    %274 = vmatpush1.msra.mxu0 0.0
    %275 = vmatprep.subr.mxu0 0.0
    %276 = vmatpush1.msra.mxu0 0.0
    %277 = vmatprep.subr.mxu0 0.0
    %278 = vmatpush1.msra.mxu0 0.0
    %279 = vmatprep.subr.mxu0 0.0
    %280 = vmatpush1.msra.mxu0 0.0
    %281 = vmatprep.subr.mxu0 0.0
    %282 = vmatpush1.msra.mxu0 0.0
    %283 = vmatprep.subr.mxu0 0.0
    %284 = vmatpush1.msra.mxu0 0.0
    %285 = vmatprep.subr.mxu0 0.0
    %286 = vmatpush1.msra.mxu0 0.0
    %287 = vmatprep.subr.mxu0 0.0
    %288 = vmatpush1.msra.mxu0 0.0
    %289 = vmatprep.subr.mxu0 0.0
    %290 = vmatpush1.msra.mxu0 0.0
    %291 = vmatprep.subr.mxu0 0.0
    %292 = vmatpush1.msra.mxu0 0.0
    %293 = vmatprep.subr.mxu0 0.0
    %294 = vmatpush1.msra.mxu0 0.0
    %295 = vmatprep.subr.mxu0 0.0
    %296 = vmatpush1.msra.mxu0 0.0
    %297 = vmatprep.subr.mxu0 0.0
    %298 = vmatpush1.msra.mxu0 0.0
    %299 = vmatprep.subr.mxu0 0.0
    %300 = vmatpush1.msra.mxu0 0.0
    %301 = vmatprep.subr.mxu0 0.0
    %302 = vmatpush1.msra.mxu0 0.0
    %303 = vmatprep.mubr.f32.mxu0 0.0
    %304 = vmatmul.mubr.f32.gmra.mrb[0].mxu0 %v215
    %v305 = vpop.f32.mrb[0].mxu0
    %v306 = vadd.f32 %v237, %v305
    %v307 = vpop.f32.mrb[0].mxu0
    %308 = vdwg.mxu0
    %vm309 = vcmask 523264
    %310 = vst.msk [vmem:[#allocation4] sm:$0xff] %vm309, %v306
    %v311 = vld [vmem:[%s7] sm:$0xff]
    %v312 = vld [vmem:[%s7 + $0x8] sm:$0xff]
    %v313 = vld [vmem:[%s7 + $0x10] sm:$0xff]
    %v314 = vld [vmem:[%s7 + $0x18] sm:$0xff]
    %v315 = vld [vmem:[%s7 + $0x20] sm:$0xff]
    %v316 = vld [vmem:[%s7 + $0x28] sm:$0xff]
    %v317 = vld [vmem:[%s7 + $0x30] sm:$0xff]
    %v318 = vld [vmem:[%s7 + $0x38] sm:$0xff]
    %v319 = vld [vmem:[%s8] sm:$0x1]
    %v321 = vlaneseq
    %v322 = vshrl.u32 %v321, 7
    %v323 = vsub.s32 0, %v322
    %v324 = vrot.slane %v319, %v323
    %v327 = vsel %vm309, %v306, 0
    %329 = vmatprep.subr.mxu0 0.0
    %330 = vmatpush1.msra.mxu0 %v311
    %331 = vmatprep.subr.mxu0 0.0
    %332 = vmatpush1.msra.mxu0 %v312
    %333 = vmatprep.subr.mxu0 0.0
    %334 = vmatpush1.msra.mxu0 %v313
    %335 = vmatprep.subr.mxu0 0.0
    %336 = vmatpush1.msra.mxu0 %v314
    %337 = vmatprep.subr.mxu0 0.0
    %338 = vmatpush1.msra.mxu0 %v315
    %339 = vmatprep.subr.mxu0 0.0
    %340 = vmatpush1.msra.mxu0 %v316
    %341 = vmatprep.subr.mxu0 0.0
    %342 = vmatpush1.msra.mxu0 %v317
    %343 = vmatprep.subr.mxu0 0.0
    %344 = vmatpush1.msra.mxu0 %v318
    %345 = vmatprep.subr.mxu0 0.0
    %346 = vmatpush1.msra.mxu0 0.0
    %347 = vmatprep.subr.mxu0 0.0
    %348 = vmatpush1.msra.mxu0 0.0
    %349 = vmatprep.subr.mxu0 0.0
    %350 = vmatpush1.msra.mxu0 0.0
    %351 = vmatprep.subr.mxu0 0.0
    %352 = vmatpush1.msra.mxu0 0.0
    %353 = vmatprep.subr.mxu0 0.0
    %354 = vmatpush1.msra.mxu0 0.0
    %355 = vmatprep.subr.mxu0 0.0
    %356 = vmatpush1.msra.mxu0 0.0
    %357 = vmatprep.subr.mxu0 0.0
    %358 = vmatpush1.msra.mxu0 0.0
    %359 = vmatprep.subr.mxu0 0.0
    %360 = vmatpush1.msra.mxu0 0.0
    %361 = vmatprep.subr.mxu0 0.0
    %362 = vmatpush1.msra.mxu0 0.0
    %363 = vmatprep.subr.mxu0 0.0
    %364 = vmatpush1.msra.mxu0 0.0
    %365 = vmatprep.subr.mxu0 0.0
    %366 = vmatpush1.msra.mxu0 0.0
    %367 = vmatprep.subr.mxu0 0.0
    %368 = vmatpush1.msra.mxu0 0.0
    %369 = vmatprep.subr.mxu0 0.0
    %370 = vmatpush1.msra.mxu0 0.0
    %371 = vmatprep.subr.mxu0 0.0
    %372 = vmatpush1.msra.mxu0 0.0
    %373 = vmatprep.subr.mxu0 0.0
    %374 = vmatpush1.msra.mxu0 0.0
    %375 = vmatprep.subr.mxu0 0.0
    %376 = vmatpush1.msra.mxu0 0.0
    %377 = vmatprep.subr.mxu0 0.0
    %378 = vmatpush1.msra.mxu0 0.0
    %379 = vmatprep.subr.mxu0 0.0
    %380 = vmatpush1.msra.mxu0 0.0
    %381 = vmatprep.subr.mxu0 0.0
    %382 = vmatpush1.msra.mxu0 0.0
    %383 = vmatprep.subr.mxu0 0.0
    %384 = vmatpush1.msra.mxu0 0.0
    %385 = vmatprep.subr.mxu0 0.0
    %386 = vmatpush1.msra.mxu0 0.0
    %387 = vmatprep.subr.mxu0 0.0
    %388 = vmatpush1.msra.mxu0 0.0
    %389 = vmatprep.subr.mxu0 0.0
    %390 = vmatpush1.msra.mxu0 0.0
    %391 = vmatprep.subr.mxu0 0.0
    %392 = vmatpush1.msra.mxu0 0.0
    %393 = vmatprep.mubr.f32.mxu0 0.0
    %394 = vmatmul.mubr.f32.gmra.mrb[0].mxu0 %v327
    %v395 = vpop.f32.mrb[0].mxu0
    %v396 = vadd.f32 %v324, %v395
    %v397 = vpop.f32.mrb[0].mxu0
    %398 = vdwg.mxu0
    %399 = vst.msk [vmem:[#allocation2] sm:$0xff] %vm124, %v396
    // Predicated region
    $region38: #{mae_forward.1} parent=1 // pred_check
      _
    $region39: #{mae_forward.1} parent=1 // pred_check_branch
      %401 = sbr.rel (0) target = $region41
    $region40: #{mae_forward.1} parent=1 // pred_region
      %s403 = ssub.s32 128, 128
      %404 = vsyncadd [#allocation3], %s403
      %s406 = sshll.u32 [#allocation2], 4
      %s407 = int_to_ptr.vmem [resolvable:$true] %s406
      %409 = dma.vmem_to_hbm [thread:$0]  %s407, 128, %s9, [#allocation3]
    $region41: #{mae_forward.1} parent=1 // pred_fallthru
      _
    // Predicated region
    $region42: #{mae_forward.1} parent=1 // pred_check
      _
    $region43: #{mae_forward.1} parent=1 // pred_check_branch
      %411 = sbr.rel (0) target = $region45
    $region44: #{mae_forward.1} parent=1 // pred_region
      %s413 = ssub.s32 128, 128
      %414 = vsyncadd [#allocation5], %s413
      %s416 = sshll.u32 [#allocation4], 4
      %s417 = int_to_ptr.vmem [resolvable:$true] %s416
      %419 = dma.vmem_to_hbm [thread:$0]  %s417, 128, %s10, [#allocation5]
    $region45: #{mae_forward.1} parent=1 // pred_fallthru
      _
    // Predicated region
    $region46: #{mae_forward.1} parent=1 // pred_check
      _
    $region47: #{mae_forward.1} parent=1 // pred_check_branch
      %421 = sbr.rel (0) target = $region49
    $region48: #{mae_forward.1} parent=1 // pred_region
      %s423 = ssub.s32 128, 128
      %424 = vsyncadd [#allocation5], %s423
      %s426 = sshll.u32 [#allocation6], 4
      %s427 = int_to_ptr.vmem [resolvable:$true] %s426
      %429 = dma.vmem_to_hbm [thread:$0]  %s427, 128, %s11, [#allocation5]
    $region49: #{mae_forward.1} parent=1 // pred_fallthru
      _
    // Predicated region
    $region50: #{mae_forward.1} parent=1 // pred_check
      _
    $region51: #{mae_forward.1} parent=1 // pred_check_branch
      %431 = sbr.rel (0) target = $region53
    $region52: #{mae_forward.1} parent=1 // pred_region
      %432 = dma.done [#allocation3], 128
    $region53: #{mae_forward.1} parent=1 // pred_fallthru
      _
    // Predicated region
    $region54: #{mae_forward.1} parent=1 // pred_check
      _
    $region55: #{mae_forward.1} parent=1 // pred_check_branch
      %434 = sbr.rel (0) target = $region57
    $region56: #{mae_forward.1} parent=1 // pred_region
      %435 = dma.done [#allocation5], 128
    $region57: #{mae_forward.1} parent=1 // pred_fallthru
      _
    // Predicated region
    $region58: #{mae_forward.1} parent=1 // pred_check
      _
    $region59: #{mae_forward.1} parent=1 // pred_check_branch
      %437 = sbr.rel (0) target = $region61
    $region60: #{mae_forward.1} parent=1 // pred_region
      %438 = dma.done [#allocation5], 128
    $region61: #{mae_forward.1} parent=1 // pred_fallthru
      _
    %439 = vsyncpa [#allocation3], 1
    %440 = vsyncpa [#allocation5], 1

</llo_original>
